<compile_context>
chip_gen: v5e
topology: v5e:2x2
jax: 0.10.0
libtpu: 0.0.40
codegen_flags: <defaults>
</compile_context>

<pallas_src>
import jax
import jax.numpy as jnp
from jax import lax
from jax.experimental import pallas as pl
from jax.experimental.pallas import tpu as pltpu


def _round_up(v, m):
    return (v + m - 1) // m * m


def _ipo_kernel_single(theta_ref, x_ref, p_ref, o_ref):
    """Single-K-step kernel: whole contraction in one MXU pass per (i, j) tile.

    theta_ref : (1, D)   full theta (grid-invariant block)
    x_ref     : (tm, D)  tile of x
    p_ref     : (tn, D)  tile of P
    o_ref     : (tm, tn) output tile
    """
    s = x_ref[...] * theta_ref[...]                       # scale the SMALL operand (VPU)
    o_ref[...] = lax.dot_general(
        s, p_ref[...],
        dimension_numbers=(((1,), (1,)), ((), ())),       # contract D of both; no transpose
        preferred_element_type=jnp.float32,
    ).astype(o_ref.dtype)


def _ipo_kernel_acc(theta_ref, x_ref, p_ref, o_ref, acc_ref):
    """K-tiled kernel with an f32 accumulator resident across the K axis."""
    k = pl.program_id(2)

    @pl.when(k == 0)
    def _():
        acc_ref[...] = jnp.zeros_like(acc_ref)

    s = x_ref[...] * theta_ref[...]                       # (tm, tk)
    acc_ref[...] += lax.dot_general(
        s, p_ref[...],
        dimension_numbers=(((1,), (1,)), ((), ())),
        preferred_element_type=jnp.float32,
    )

    @pl.when(k == pl.num_programs(2) - 1)
    def _():
        o_ref[...] = acc_ref[...].astype(o_ref.dtype)


def ipo_forward(x, P, theta, *, tm=None, tn=None, tk=None):
    """y_hat = x @ (theta * P).T == (x * theta) @ P.T via a tiled Pallas matmul."""
    B, D = x.shape
    N, D2 = P.shape
    assert D == D2 and theta.shape == (D,)

    # ---- tile selection ----
    if tm is None:
        tm = min(_round_up(B, 8), 256)        # collapse the i axis when B is small
    if tn is None:
        tn = min(_round_up(N, 128), 512)      # lane-dense output, multiple of 128/256
    if tk is None:
        dk = _round_up(D, 128)
        tk = dk if dk <= 2048 else 512        # collapse the K axis when D is moderate

    Bp, Np, Dp = _round_up(B, tm), _round_up(N, tn), _round_up(D, tk)

    # ---- zero-pad to tile multiples (zeros do not change the matmul) ----
    xp = x if (Bp, Dp) == (B, D) else jnp.pad(x, ((0, Bp - B), (0, Dp - D)))
    Pp = P if (Np, Dp) == (N, D) else jnp.pad(P, ((0, Np - N), (0, Dp - D)))
    thp = theta if Dp == D else jnp.pad(theta, (0, Dp - D))
    theta2d = thp.reshape(1, Dp)

    n_i, n_j, n_k = Bp // tm, Np // tn, Dp // tk

    # Rough double-buffered VMEM budget with 2x headroom; clamp so the limit is
    # safe on v5e (small scoped default) and under v7x's 64 MiB physical VMEM.
    elem = jnp.dtype(x.dtype).itemsize
    est = 2 * (tm * tk + tn * tk + tm * tn) * elem + tm * tn * 4 + 2 * tk * 4
    vmem_limit = int(min(max(2 * est, 16 * 1024 * 1024), 48 * 1024 * 1024))

    if n_k == 1:
        # No K loop: no accumulator, no init/finalize branches, theta loaded once.
        out = pl.pallas_call(
            _ipo_kernel_single,
            out_shape=jax.ShapeDtypeStruct((Bp, Np), x.dtype),
            grid_spec=pltpu.PrefetchScalarGridSpec(
                num_scalar_prefetch=0,
                grid=(n_i, n_j),
                in_specs=[
                    pl.BlockSpec((1, tk), lambda i, j: (0, 0)),    # theta (grid-invariant)
                    pl.BlockSpec((tm, tk), lambda i, j: (i, 0)),   # x
                    pl.BlockSpec((tn, tk), lambda i, j: (j, 0)),   # P
                ],
                out_specs=pl.BlockSpec((tm, tn), lambda i, j: (i, j)),
            ),
            compiler_params=pltpu.CompilerParams(
                dimension_semantics=("parallel", "parallel"),
                vmem_limit_bytes=vmem_limit,
            ),
        )(theta2d, xp, Pp)
    else:
        out = pl.pallas_call(
            _ipo_kernel_acc,
            out_shape=jax.ShapeDtypeStruct((Bp, Np), x.dtype),
            grid_spec=pltpu.PrefetchScalarGridSpec(
                num_scalar_prefetch=0,
                grid=(n_i, n_j, n_k),
                in_specs=[
                    pl.BlockSpec((1, tk), lambda i, j, k: (0, k)),   # theta slice
                    pl.BlockSpec((tm, tk), lambda i, j, k: (i, k)),  # x
                    pl.BlockSpec((tn, tk), lambda i, j, k: (j, k)),  # P
                ],
                out_specs=pl.BlockSpec((tm, tn), lambda i, j, k: (i, j)),
                scratch_shapes=[pltpu.VMEM((tm, tn), jnp.float32)],
            ),
            compiler_params=pltpu.CompilerParams(
                dimension_semantics=("parallel", "parallel", "arbitrary"),
                vmem_limit_bytes=vmem_limit,
            ),
        )(theta2d, xp, Pp)

    return out[:B, :N]


if __name__ == "__main__":
    # Small deterministic shapes consistent with the module:
    #   P : (N, D), theta : (D,), x : (B, D)  ->  y_hat : (B, N)
    B, N, D = 16, 128, 256

    key = jax.random.PRNGKey(0)
    k_p, k_theta, k_x = jax.random.split(key, 3)

    P = jax.random.normal(k_p, (N, D), dtype=jnp.float32)
    theta = jax.random.normal(k_theta, (D,), dtype=jnp.float32)  # torch.randn(P.shape[1])
    x = jax.random.normal(k_x, (B, D), dtype=jnp.float32)

    y = ipo_forward(x, P, theta)
    y = jax.block_until_ready(y)

    # Pure-JAX reference (same semantics as the PyTorch forward).
    y_ref = x @ (theta * P).T
    assert y.shape == (B, N)
    assert jnp.allclose(y, y_ref, atol=1e-3, rtol=1e-4), "mismatch vs reference"

    print("KERNEL_OK")
</pallas_src>

<mosaic_0001>
module attributes {stable_mosaic.version = 11 : i64} {
  func.func @_ipo_kernel_single(%arg0: i32, %arg1: i32, %arg2: memref<1x256xf32, #tpu.memory_space<vmem>>, %arg3: memref<16x256xf32, #tpu.memory_space<vmem>>, %arg4: memref<128x256xf32, #tpu.memory_space<vmem>>, %arg5: memref<16x128xf32, #tpu.memory_space<vmem>>) attributes {dimension_semantics = [#tpu.dimension_semantics<parallel>, #tpu.dimension_semantics<parallel>], iteration_bounds = array<i64: 1, 1>, scalar_prefetch = 0 : i64, scratch_operands = 0 : i64, tpu.core_type = #tpu.core_type<tc>, window_params = [{pipeline_mode = #tpu.pipeline_mode<synchronous>, transform_indices = @transform_0, window_bounds = array<i64: 1, 256>}, {transform_indices = @transform_1, window_bounds = array<i64: 16, 256>}, {transform_indices = @transform_2, window_bounds = array<i64: 128, 256>}, {transform_indices = @transform_3, window_bounds = array<i64: 16, 128>}]} {
    %c0 = arith.constant 0 : index
    %c0_0 = arith.constant 0 : index
    %0 = vector.load %arg3[%c0, %c0_0] : memref<16x256xf32, #tpu.memory_space<vmem>>, vector<16x256xf32>
    %c0_1 = arith.constant 0 : index
    %c0_2 = arith.constant 0 : index
    %1 = vector.load %arg2[%c0_1, %c0_2] : memref<1x256xf32, #tpu.memory_space<vmem>>, vector<1x256xf32>
    %2 = vector.broadcast %1 : vector<1x256xf32> to vector<16x256xf32>
    %3 = arith.mulf %0, %2 : vector<16x256xf32>
    %c0_3 = arith.constant 0 : index
    %c0_4 = arith.constant 0 : index
    %4 = vector.load %arg4[%c0_3, %c0_4] : memref<128x256xf32, #tpu.memory_space<vmem>>, vector<128x256xf32>
    %cst = arith.constant dense<0.000000e+00> : vector<16x128xf32>
    %5 = tpu.matmul %3, %4, %cst {dimension_numbers = #tpu.dot_dimension_numbers<[1], [1], [0], [0], [0, 0, 1, 0], [], []>} : vector<16x256xf32>, vector<128x256xf32>, vector<16x128xf32> -> vector<16x128xf32>
    %c0_5 = arith.constant 0 : index
    %c0_6 = arith.constant 0 : index
    %6 = vector.load %arg5[%c0_5, %c0_6] : memref<16x128xf32, #tpu.memory_space<vmem>>, vector<16x128xf32>
    tpu.vector_store %arg5[%c0_5, %c0_6], %5 {strides = array<i32>} : memref<16x128xf32, #tpu.memory_space<vmem>>, vector<16x128xf32>,
    return
  }
  func.func @transform_0(%arg0: i32, %arg1: i32) -> (i32, i32) {
    %c0_i32 = arith.constant 0 : i32
    %c0_i32_0 = arith.constant 0 : i32
    %c0_i32_1 = arith.constant 0 : i32
    return %c0_i32, %c0_i32_0 : i32, i32
  }
  func.func @transform_1(%arg0: i32, %arg1: i32) -> (i32, i32) {
    %c0_i32 = arith.constant 0 : i32
    %c0_i32_0 = arith.constant 0 : i32
    return %arg0, %c0_i32 : i32, i32
  }
  func.func @transform_2(%arg0: i32, %arg1: i32) -> (i32, i32) {
    %c0_i32 = arith.constant 0 : i32
    %c0_i32_0 = arith.constant 0 : i32
    return %arg1, %c0_i32 : i32, i32
  }
  func.func @transform_3(%arg0: i32, %arg1: i32) -> (i32, i32) {
    %c0_i32 = arith.constant 0 : i32
    return %arg0, %arg1 : i32, i32
  }
}

</mosaic_0001>

<llo_original>
// kernel: tpu_custom_call.1
$region0: #{tpu_custom_call.1}
  #allocation0 [shape = 'u32[]', space=smem, size = 0x4, offset = 0x4, fixed_abs, tag = 'smem constant byte address 0x4 - core index']
  #allocation1 [shape = 'u32[72,128]{1,0:T(1,128)}', space=vmem, size = 0x9000, scoped, tag = 'internal scratch']
  %s0 = inlined_call_operand.hbm [shape: f32[1,256], index: 0, kind: input, shape index: {}]
  %s1 = inlined_call_operand.hbm [shape: f32[16,256], index: 1, kind: input, shape index: {}]
  %s2 = inlined_call_operand.hbm [shape: f32[128,256], index: 2, kind: input, shape index: {}]
  %s3 = inlined_call_operand.hbm [shape: f32[16,128], index: 3, kind: output, shape index: {}]
  %s4 = sld [smem:[#allocation0]]
  $region34: #{tpu_custom_call.1} parent=0
    _
  %s6 = ssub.s32 1, %s4
  %s7 = scalar_select 0, %s6, %s4
  $region1: #{tpu_custom_call.1} parent=0
    #allocation2 [shape = 'u8[1024]{0}', space=vmem, size = 0x400, scoped, tag = 'input window, operand 0, single buffered']
    #allocation3 [shape = 's32[1]{0}', space=sflag, size = 0x4, scoped, tag = 'scoped memory for tpu_custom_call.1']
    #allocation4 [shape = 's32[1]{0}', space=sflag, size = 0x4, scoped, tag = 'scoped memory for tpu_custom_call.1']
    #allocation5 [shape = 'u8[16384]{0}', space=vmem, size = 0x4000, scoped, tag = 'input window, operand 1, single buffered']
    #allocation6 [shape = 's32[1]{0}', space=sflag, size = 0x4, scoped, tag = 'scoped memory for tpu_custom_call.1']
    #allocation7 [shape = 'u8[131072]{0}', space=vmem, size = 0x20000, scoped, tag = 'input window, operand 2, single buffered']
    #allocation8 [shape = 'u8[8192]{0}', space=vmem, size = 0x2000, scoped, tag = 'output window, operand 0, single buffered']
    %8 = vsyncpa [#allocation3], 0
    %9 = vsyncpa [#allocation6], 0
    %10 = vsyncpa [#allocation4], 0
    // Predicated region
    $region2: #{tpu_custom_call.1} parent=1 // pred_check
      _
    $region3: #{tpu_custom_call.1} parent=1 // pred_check_branch
      %12 = sbr.rel (0) target = $region5
    $region4: #{tpu_custom_call.1} parent=1 // pred_region
      %14 = vsyncadd [#allocation3], 0
      %s16 = sshll.u32 %s0, 4
      %s17 = int_to_ptr.hbm [resolvable:$true] %s16
      %s18 = sshll.u32 [#allocation2], 4
      %s19 = int_to_ptr.vmem [resolvable:$true] %s18
      %21 = dma.hbm_to_vmem [thread:$0]  %s17, 32, %s19, [#allocation3]
    $region5: #{tpu_custom_call.1} parent=1 // pred_fallthru
      _
    // Predicated region
    $region6: #{tpu_custom_call.1} parent=1 // pred_check
      _
    $region7: #{tpu_custom_call.1} parent=1 // pred_check_branch
      %23 = sbr.rel (0) target = $region9
    $region8: #{tpu_custom_call.1} parent=1 // pred_region
      %25 = vsyncadd [#allocation6], 0
      %s26 = sshll.u32 %s1, 4
      %s27 = int_to_ptr.hbm [resolvable:$true] %s26
      %s28 = sshll.u32 [#allocation5], 4
      %s29 = int_to_ptr.vmem [resolvable:$true] %s28
      %34 = dma.hbm_to_vmem [thread:$0]  %s27, 512, %s29, [#allocation6], 256, 256, 16
    $region9: #{tpu_custom_call.1} parent=1 // pred_fallthru
      _
    // Predicated region
    $region10: #{tpu_custom_call.1} parent=1 // pred_check
      _
    $region11: #{tpu_custom_call.1} parent=1 // pred_check_branch
      %36 = sbr.rel (0) target = $region13
    $region12: #{tpu_custom_call.1} parent=1 // pred_region
      %38 = vsyncadd [#allocation6], 0
      %s39 = sshll.u32 %s2, 4
      %s40 = int_to_ptr.hbm [resolvable:$true] %s39
      %s41 = sshll.u32 [#allocation7], 4
      %s42 = int_to_ptr.vmem [resolvable:$true] %s41
      %47 = dma.hbm_to_vmem [thread:$0]  %s40, 4096, %s42, [#allocation6], 256, 256, 16
    $region13: #{tpu_custom_call.1} parent=1 // pred_fallthru
      _
    // Predicated region
    $region14: #{tpu_custom_call.1} parent=1 // pred_check
      _
    $region15: #{tpu_custom_call.1} parent=1 // pred_check_branch
      %49 = sbr.rel (0) target = $region17
    $region16: #{tpu_custom_call.1} parent=1 // pred_region
      %51 = dma.done [#allocation3], 32
    $region17: #{tpu_custom_call.1} parent=1 // pred_fallthru
      _
    // Predicated region
    $region18: #{tpu_custom_call.1} parent=1 // pred_check
      _
    $region19: #{tpu_custom_call.1} parent=1 // pred_check_branch
      %53 = sbr.rel (0) target = $region21
    $region20: #{tpu_custom_call.1} parent=1 // pred_region
      %55 = dma.done [#allocation6], 512
    $region21: #{tpu_custom_call.1} parent=1 // pred_fallthru
      _
    // Predicated region
    $region22: #{tpu_custom_call.1} parent=1 // pred_check
      _
    $region23: #{tpu_custom_call.1} parent=1 // pred_check_branch
      %57 = sbr.rel (0) target = $region25
    $region24: #{tpu_custom_call.1} parent=1 // pred_region
      %59 = dma.done [#allocation6], 4096
    $region25: #{tpu_custom_call.1} parent=1 // pred_fallthru
      _
    %v60 = vld [vmem:[#allocation5] sm:$0xff]
    %v61 = vld [vmem:[#allocation5 + $0x8] sm:$0xff]
    %v62 = vld [vmem:[#allocation5 + $0x10] sm:$0xff]
    %v63 = vld [vmem:[#allocation5 + $0x18] sm:$0xff]
    %v64 = vld [vmem:[#allocation2] sm:$0x3]
    %v66 = vperm.slane %v64, 0
    %v67 = vperm.slane %v64, 1
    %v70 = vmul.f32 %v60, %v66
    %v71 = vmul.f32 %v61, %v67
    %v72 = vmul.f32 %v62, %v66
    %v73 = vmul.f32 %v63, %v67
    %v74 = vld [vmem:[#allocation7] sm:$0xff]
    %v75 = vld [vmem:[#allocation7 + $0x8] sm:$0xff]
    %v76 = vld [vmem:[#allocation7 + $0x10] sm:$0xff]
    %v77 = vld [vmem:[#allocation7 + $0x18] sm:$0xff]
    %v78 = vld [vmem:[#allocation7 + $0x20] sm:$0xff]
    %v79 = vld [vmem:[#allocation7 + $0x28] sm:$0xff]
    %v80 = vld [vmem:[#allocation7 + $0x30] sm:$0xff]
    %v81 = vld [vmem:[#allocation7 + $0x38] sm:$0xff]
    %v82 = vld [vmem:[#allocation7 + $0x40] sm:$0xff]
    %v83 = vld [vmem:[#allocation7 + $0x48] sm:$0xff]
    %v84 = vld [vmem:[#allocation7 + $0x50] sm:$0xff]
    %v85 = vld [vmem:[#allocation7 + $0x58] sm:$0xff]
    %v86 = vld [vmem:[#allocation7 + $0x60] sm:$0xff]
    %v87 = vld [vmem:[#allocation7 + $0x68] sm:$0xff]
    %v88 = vld [vmem:[#allocation7 + $0x70] sm:$0xff]
    %v89 = vld [vmem:[#allocation7 + $0x78] sm:$0xff]
    %v90 = vld [vmem:[#allocation7 + $0x80] sm:$0xff]
    %v91 = vld [vmem:[#allocation7 + $0x88] sm:$0xff]
    %v92 = vld [vmem:[#allocation7 + $0x90] sm:$0xff]
    %v93 = vld [vmem:[#allocation7 + $0x98] sm:$0xff]
    %v94 = vld [vmem:[#allocation7 + $0xa0] sm:$0xff]
    %v95 = vld [vmem:[#allocation7 + $0xa8] sm:$0xff]
    %v96 = vld [vmem:[#allocation7 + $0xb0] sm:$0xff]
    %v97 = vld [vmem:[#allocation7 + $0xb8] sm:$0xff]
    %v98 = vld [vmem:[#allocation7 + $0xc0] sm:$0xff]
    %v99 = vld [vmem:[#allocation7 + $0xc8] sm:$0xff]
    %v100 = vld [vmem:[#allocation7 + $0xd0] sm:$0xff]
    %v101 = vld [vmem:[#allocation7 + $0xd8] sm:$0xff]
    %v102 = vld [vmem:[#allocation7 + $0xe0] sm:$0xff]
    %v103 = vld [vmem:[#allocation7 + $0xe8] sm:$0xff]
    %v104 = vld [vmem:[#allocation7 + $0xf0] sm:$0xff]
    %v105 = vld [vmem:[#allocation7 + $0xf8] sm:$0xff]
    %106 = vmatpush.xpose.msra.mxu0 %v104
    %107 = vmatpush.xpose.msra.mxu0 %v102
    %108 = vmatpush.xpose.msra.mxu0 %v100
    %109 = vmatpush.xpose.msra.mxu0 %v98
    %110 = vmatpush.xpose.msra.mxu0 %v96
    %111 = vmatpush.xpose.msra.mxu0 %v94
    %112 = vmatpush.xpose.msra.mxu0 %v92
    %113 = vmatpush.xpose.msra.mxu0 %v90
    %114 = vmatpush.xpose.msra.mxu0 %v88
    %115 = vmatpush.xpose.msra.mxu0 %v86
    %116 = vmatpush.xpose.msra.mxu0 %v84
    %117 = vmatpush.xpose.msra.mxu0 %v82
    %118 = vmatpush.xpose.msra.mxu0 %v80
    %119 = vmatpush.xpose.msra.mxu0 %v78
    %120 = vmatpush.xpose.msra.mxu0 %v76
    %121 = vmatpush.xpose.msra.mxu0 %v74
    %122 = vmatmul.f32.gmra.mxu0 %v70
    %v123 = vpop.f32.mrf.mxu0
    %v124 = vadd.f32 0.0, %v123
    %125 = vmatmul.f32.gmra.mxu0 %v72
    %v126 = vpop.f32.mrf.mxu0
    %v127 = vadd.f32 0.0, %v126
    %128 = vdwg.mxu0
    %129 = vmatpush.xpose.msra.mxu0 %v105
    %130 = vmatpush.xpose.msra.mxu0 %v103
    %131 = vmatpush.xpose.msra.mxu0 %v101
    %132 = vmatpush.xpose.msra.mxu0 %v99
    %133 = vmatpush.xpose.msra.mxu0 %v97
    %134 = vmatpush.xpose.msra.mxu0 %v95
    %135 = vmatpush.xpose.msra.mxu0 %v93
    %136 = vmatpush.xpose.msra.mxu0 %v91
    %137 = vmatpush.xpose.msra.mxu0 %v89
    %138 = vmatpush.xpose.msra.mxu0 %v87
    %139 = vmatpush.xpose.msra.mxu0 %v85
    %140 = vmatpush.xpose.msra.mxu0 %v83
    %141 = vmatpush.xpose.msra.mxu0 %v81
    %142 = vmatpush.xpose.msra.mxu0 %v79
    %143 = vmatpush.xpose.msra.mxu0 %v77
    %144 = vmatpush.xpose.msra.mxu0 %v75
    %145 = vmatmul.f32.gmra.mxu0 %v71
    %v146 = vpop.f32.mrf.mxu0
    %v147 = vadd.f32 %v124, %v146
    %148 = vmatmul.f32.gmra.mxu0 %v73
    %v149 = vpop.f32.mrf.mxu0
    %v150 = vadd.f32 %v127, %v149
    %151 = vdwg.mxu0
    %152 = vst [vmem:[#allocation8] sm:$0xff] %v147
    %153 = vst [vmem:[#allocation8 + $0x8] sm:$0xff] %v150
    // Predicated region
    $region26: #{tpu_custom_call.1} parent=1 // pred_check
      _
    $region27: #{tpu_custom_call.1} parent=1 // pred_check_branch
      %155 = sbr.rel (0) target = $region29
    $region28: #{tpu_custom_call.1} parent=1 // pred_region
      %157 = vsyncadd [#allocation4], 0
      %s158 = sshll.u32 [#allocation8], 4
      %s159 = int_to_ptr.vmem [resolvable:$true] %s158
      %s160 = sshll.u32 %s3, 4
      %s161 = int_to_ptr.hbm [resolvable:$true] %s160
      %166 = dma.vmem_to_hbm [thread:$0]  %s159, 256, %s161, [#allocation4], 128, 128, 8
    $region29: #{tpu_custom_call.1} parent=1 // pred_fallthru
      _
    // Predicated region
    $region30: #{tpu_custom_call.1} parent=1 // pred_check
      _
    $region31: #{tpu_custom_call.1} parent=1 // pred_check_branch
      %168 = sbr.rel (0) target = $region33
    $region32: #{tpu_custom_call.1} parent=1 // pred_region
      %170 = dma.done [#allocation4], 256
    $region33: #{tpu_custom_call.1} parent=1 // pred_fallthru
      _
    %171 = vsyncpa [#allocation3], 1
    %172 = vsyncpa [#allocation6], 1
    %173 = vsyncpa [#allocation4], 1

</llo_original>
